<compile_context>
chip_gen: v7x
topology: tpu7x:2x2x1
jax: 0.10.0
libtpu: 0.0.40
codegen_flags: <defaults>
</compile_context>

<pallas_src>
import jax
import jax.numpy as jnp
from jax.experimental import pallas as pl
from jax.experimental.pallas import tpu as pltpu


def _round_up(x, m):
    return -(-x // m) * m


def _critic_kernel(sT_ref, aT_ref, w1s_ref, w1a_ref, b1_ref, w2_ref, b2_ref,
                   w3_ref, b3_ref, o_ref):
    # Streamed activation blocks, batch on the lane axis.  Widen to f32
    # immediately after load (no-op for f32 inputs; mandatory before the VPU
    # bias/relu on v5e, which has no bf16 VALU).
    sT = sT_ref[...].astype(jnp.float32)             # (num_inputs,  tile_b)
    aT = aT_ref[...].astype(jnp.float32)             # (num_actions, tile_b)

    # Layer 1 -- concat fused via split W1: h1 = W1s @ s^T + W1a @ a^T + b1.
    h1 = jnp.dot(w1s_ref[...], sT, preferred_element_type=jnp.float32)
    h1 = h1 + jnp.dot(w1a_ref[...], aT, preferred_element_type=jnp.float32)
    h1 = jnp.maximum(h1 + b1_ref[...], 0.0)          # (hidden, tile_b)

    # Layer 2.
    h2 = jnp.dot(w2_ref[...], h1, preferred_element_type=jnp.float32)
    h2 = jnp.maximum(h2 + b2_ref[...], 0.0)          # (hidden, tile_b)

    # Layer 3: (1, hidden) @ (hidden, tile_b) -> lane-dense (1, tile_b) row.
    q = jnp.dot(w3_ref[...], h2, preferred_element_type=jnp.float32)
    o_ref[...] = (q + b3_ref[0]).astype(o_ref.dtype)


def critic_forward(state, action, params, *, batch_tile=4096,
                   activation_dtype=jnp.float32):
    """Pallas implementation of Critic.forward(state, action) -> (B, 1)."""
    w1s, w1a, b1, w2, b2, w3, b3 = params
    B, num_inputs = state.shape
    num_actions = action.shape[1]
    hidden = w2.shape[0]

    # Tiling: lane-dense (multiple-of-128) batch tiles; one grid step for
    # moderate B, otherwise an even number of tiles so the "parallel" axis
    # splits evenly across v7x's two TensorCores.
    if B <= batch_tile:
        n_tiles = 1
    else:
        n_tiles = pl.cdiv(B, batch_tile)
        if n_tiles % 2:
            n_tiles += 1
    tile_b = _round_up(pl.cdiv(B, n_tiles), 128)
    b_pad = n_tiles * tile_b

    # Transpose so batch is the lane (last) axis; zero-pad; optional bf16.
    sT = jnp.pad(state.T, ((0, 0), (0, b_pad - B))).astype(activation_dtype)
    aT = jnp.pad(action.T, ((0, 0), (0, b_pad - B))).astype(activation_dtype)

    def resident(shape):
        # Same block every grid step -> stays VMEM-resident across the grid.
        return pl.BlockSpec(shape, lambda i: (0, 0))

    out = pl.pallas_call(
        _critic_kernel,
        out_shape=jax.ShapeDtypeStruct((1, b_pad), jnp.float32),
        grid=(n_tiles,),
        in_specs=[
            pl.BlockSpec((num_inputs, tile_b), lambda i: (0, i)),   # state^T
            pl.BlockSpec((num_actions, tile_b), lambda i: (0, i)),  # action^T
            resident((hidden, num_inputs)),                         # W1_state
            resident((hidden, num_actions)),                        # W1_action
            resident((hidden, 1)),                                  # b1
            resident((hidden, hidden)),                             # W2
            resident((hidden, 1)),                                  # b2
            resident((1, hidden)),                                  # W3
            pl.BlockSpec(memory_space=pltpu.MemorySpace.SMEM),      # b3 scalar
        ],
        out_specs=pl.BlockSpec((1, tile_b), lambda i: (0, i)),
        compiler_params=pltpu.CompilerParams(
            dimension_semantics=("parallel",)),
    )(sT, aT, w1s, w1a, b1, w2, b2, w3, b3)

    return out[0, :B].reshape(B, 1)


def init_critic_params(key, num_inputs, num_actions, hidden_size):
    """PyTorch-style uniform(-1/sqrt(fan_in), 1/sqrt(fan_in)) init.

    Weights keep PyTorch's (out_features, in_features) layout; W1 is split
    along its input axis (state part / action part) so the kernel never needs
    the concatenated [state, action] tensor.  Biases b1/b2 are (H, 1) columns
    (lane-broadcast in-kernel); b3 is a (1,) scalar passed via SMEM.
    """
    d_in = num_inputs + num_actions
    ks = jax.random.split(key, 6)

    def lin(kw, kb, fan_in, fan_out):
        bound = 1.0 / jnp.sqrt(float(fan_in))
        w = jax.random.uniform(kw, (fan_out, fan_in), jnp.float32, -bound, bound)
        b = jax.random.uniform(kb, (fan_out,), jnp.float32, -bound, bound)
        return w, b

    w1, b1 = lin(ks[0], ks[1], d_in, hidden_size)
    w2, b2 = lin(ks[2], ks[3], hidden_size, hidden_size)
    w3, b3 = lin(ks[4], ks[5], hidden_size, 1)
    return (w1[:, :num_inputs], w1[:, num_inputs:], b1.reshape(hidden_size, 1),
            w2, b2.reshape(hidden_size, 1),
            w3, b3)


def critic_reference(state, action, params):
    """Plain-JAX reference (identical math to the PyTorch module)."""
    w1s, w1a, b1, w2, b2, w3, b3 = params
    x = jnp.concatenate([state, action], axis=1)            # (B, d_in)
    w1 = jnp.concatenate([w1s, w1a], axis=1)                 # (H, d_in)
    h1 = jnp.maximum(x @ w1.T + b1[:, 0], 0.0)
    h2 = jnp.maximum(h1 @ w2.T + b2[:, 0], 0.0)
    return h2 @ w3.T + b3                                    # (B, 1)


if __name__ == "__main__":
    batch = 8
    num_inputs = 12
    num_actions = 4
    hidden_size = 32

    key = jax.random.PRNGKey(0)
    k_state, k_action, k_params = jax.random.split(key, 3)
    state = jax.random.normal(k_state, (batch, num_inputs), jnp.float32)
    action = jax.random.normal(k_action, (batch, num_actions), jnp.float32)
    params = init_critic_params(k_params, num_inputs, num_actions, hidden_size)

    # Single-tile f32 path.
    q = jax.block_until_ready(critic_forward(state, action, params))
    q_ref = critic_reference(state, action, params)
    assert q.shape == (batch, 1), q.shape
    err = float(jnp.max(jnp.abs(q - q_ref)))
    assert err < 1e-2, f"f32 path max abs err = {err}"

    # Gridded path: B=1111 with batch_tile=256 -> 6 even tiles of 256 (padded).
    big_b = 1111
    kb_s, kb_a = jax.random.split(jax.random.PRNGKey(1))
    big_state = jax.random.normal(kb_s, (big_b, num_inputs), jnp.float32)
    big_action = jax.random.normal(kb_a, (big_b, num_actions), jnp.float32)
    q_big = jax.block_until_ready(
        critic_forward(big_state, big_action, params, batch_tile=256))
    q_big_ref = critic_reference(big_state, big_action, params)
    assert q_big.shape == (big_b, 1), q_big.shape
    err_big = float(jnp.max(jnp.abs(q_big - q_big_ref)))
    assert err_big < 1e-2, f"gridded path max abs err = {err_big}"

    # bf16-streamed activations (halves the HBM activation stream).
    q_bf16 = jax.block_until_ready(
        critic_forward(state, action, params, activation_dtype=jnp.bfloat16))
    err_bf16 = float(jnp.max(jnp.abs(q_bf16 - q_ref)))
    assert err_bf16 < 7e-2, f"bf16 path max abs err = {err_bf16}"

    print("KERNEL_OK")
</pallas_src>

<mosaic_0001>
module attributes {stable_mosaic.version = 11 : i64} {
  func.func @_critic_kernel(%arg0: i32, %arg1: memref<12x128xf32, #tpu.memory_space<vmem>>, %arg2: memref<4x128xf32, #tpu.memory_space<vmem>>, %arg3: memref<32x12xf32, #tpu.memory_space<vmem>>, %arg4: memref<32x4xf32, #tpu.memory_space<vmem>>, %arg5: memref<32x1xf32, #tpu.memory_space<vmem>>, %arg6: memref<32x32xf32, #tpu.memory_space<vmem>>, %arg7: memref<32x1xf32, #tpu.memory_space<vmem>>, %arg8: memref<1x32xf32, #tpu.memory_space<vmem>>, %arg9: memref<1xf32, #tpu.memory_space<smem>>, %arg10: memref<1x128xf32, #tpu.memory_space<vmem>>) attributes {dimension_semantics = [#tpu.dimension_semantics<parallel>], iteration_bounds = array<i64: 1>, scalar_prefetch = 0 : i64, scratch_operands = 0 : i64, tpu.core_type = #tpu.core_type<tc>, window_params = [{transform_indices = @transform_0, window_bounds = array<i64: 12, 128>}, {transform_indices = @transform_1, window_bounds = array<i64: 4, 128>}, {pipeline_mode = #tpu.pipeline_mode<synchronous>, transform_indices = @transform_2, window_bounds = array<i64: 32, 12>}, {pipeline_mode = #tpu.pipeline_mode<synchronous>, transform_indices = @transform_3, window_bounds = array<i64: 32, 4>}, {pipeline_mode = #tpu.pipeline_mode<synchronous>, transform_indices = @transform_4, window_bounds = array<i64: 32, 1>}, {pipeline_mode = #tpu.pipeline_mode<synchronous>, transform_indices = @transform_5, window_bounds = array<i64: 32, 32>}, {pipeline_mode = #tpu.pipeline_mode<synchronous>, transform_indices = @transform_6, window_bounds = array<i64: 32, 1>}, {pipeline_mode = #tpu.pipeline_mode<synchronous>, transform_indices = @transform_7, window_bounds = array<i64: 1, 32>}, {transform_indices = @transform_8, window_bounds = array<i64: 1>}, {transform_indices = @transform_9, window_bounds = array<i64: 1, 128>}]} {
    %c0 = arith.constant 0 : index
    %c0_0 = arith.constant 0 : index
    %0 = vector.load %arg1[%c0, %c0_0] : memref<12x128xf32, #tpu.memory_space<vmem>>, vector<12x128xf32>
    %c0_1 = arith.constant 0 : index
    %c0_2 = arith.constant 0 : index
    %1 = vector.load %arg2[%c0_1, %c0_2] : memref<4x128xf32, #tpu.memory_space<vmem>>, vector<4x128xf32>
    %c0_3 = arith.constant 0 : index
    %c0_4 = arith.constant 0 : index
    %2 = vector.load %arg3[%c0_3, %c0_4] : memref<32x12xf32, #tpu.memory_space<vmem>>, vector<32x12xf32>
    %cst = arith.constant dense<0.000000e+00> : vector<32x128xf32>
    %3 = tpu.matmul %2, %0, %cst {dimension_numbers = #tpu.dot_dimension_numbers<[1], [0], [0], [1], [0, 0, 1, 1], [], []>} : vector<32x12xf32>, vector<12x128xf32>, vector<32x128xf32> -> vector<32x128xf32>
    %c0_5 = arith.constant 0 : index
    %c0_6 = arith.constant 0 : index
    %4 = vector.load %arg4[%c0_5, %c0_6] : memref<32x4xf32, #tpu.memory_space<vmem>>, vector<32x4xf32>
    %cst_7 = arith.constant dense<0.000000e+00> : vector<32x128xf32>
    %5 = tpu.matmul %4, %1, %cst_7 {dimension_numbers = #tpu.dot_dimension_numbers<[1], [0], [0], [1], [0, 0, 1, 1], [], []>} : vector<32x4xf32>, vector<4x128xf32>, vector<32x128xf32> -> vector<32x128xf32>
    %6 = arith.addf %3, %5 : vector<32x128xf32>
    %c0_8 = arith.constant 0 : index
    %c0_9 = arith.constant 0 : index
    %7 = vector.load %arg5[%c0_8, %c0_9] : memref<32x1xf32, #tpu.memory_space<vmem>>, vector<32x1xf32>
    %8 = vector.broadcast %7 : vector<32x1xf32> to vector<32x128xf32>
    %9 = arith.addf %6, %8 : vector<32x128xf32>
    %cst_10 = arith.constant 0.000000e+00 : f32
    %10 = vector.broadcast %cst_10 : f32 to vector<32x128xf32>
    %11 = arith.maximumf %9, %10 : vector<32x128xf32>
    %c0_11 = arith.constant 0 : index
    %c0_12 = arith.constant 0 : index
    %12 = vector.load %arg6[%c0_11, %c0_12] : memref<32x32xf32, #tpu.memory_space<vmem>>, vector<32x32xf32>
    %cst_13 = arith.constant dense<0.000000e+00> : vector<32x128xf32>
    %13 = tpu.matmul %12, %11, %cst_13 {dimension_numbers = #tpu.dot_dimension_numbers<[1], [0], [0], [1], [0, 0, 1, 1], [], []>} : vector<32x32xf32>, vector<32x128xf32>, vector<32x128xf32> -> vector<32x128xf32>
    %c0_14 = arith.constant 0 : index
    %c0_15 = arith.constant 0 : index
    %14 = vector.load %arg7[%c0_14, %c0_15] : memref<32x1xf32, #tpu.memory_space<vmem>>, vector<32x1xf32>
    %15 = vector.broadcast %14 : vector<32x1xf32> to vector<32x128xf32>
    %16 = arith.addf %13, %15 : vector<32x128xf32>
    %cst_16 = arith.constant 0.000000e+00 : f32
    %17 = vector.broadcast %cst_16 : f32 to vector<32x128xf32>
    %18 = arith.maximumf %16, %17 : vector<32x128xf32>
    %c0_17 = arith.constant 0 : index
    %c0_18 = arith.constant 0 : index
    %19 = vector.load %arg8[%c0_17, %c0_18] : memref<1x32xf32, #tpu.memory_space<vmem>>, vector<1x32xf32>
    %cst_19 = arith.constant dense<0.000000e+00> : vector<1x128xf32>
    %20 = tpu.matmul %19, %18, %cst_19 {dimension_numbers = #tpu.dot_dimension_numbers<[1], [0], [0], [1], [0, 0, 1, 1], [], []>} : vector<1x32xf32>, vector<32x128xf32>, vector<1x128xf32> -> vector<1x128xf32>
    %c0_20 = arith.constant 0 : index
    %21 = memref.load %arg9[%c0_20] : memref<1xf32, #tpu.memory_space<smem>>
    %22 = vector.broadcast %21 : f32 to vector<1x128xf32>
    %23 = arith.addf %20, %22 : vector<1x128xf32>
    %c0_21 = arith.constant 0 : index
    %c0_22 = arith.constant 0 : index
    %24 = vector.load %arg10[%c0_21, %c0_22] : memref<1x128xf32, #tpu.memory_space<vmem>>, vector<1x128xf32>
    tpu.vector_store %arg10[%c0_21, %c0_22], %23 {strides = array<i32>} : memref<1x128xf32, #tpu.memory_space<vmem>>, vector<1x128xf32>,
    return
  }
  func.func @transform_0(%arg0: i32) -> (i32, i32) {
    %c0_i32 = arith.constant 0 : i32
    %c0_i32_0 = arith.constant 0 : i32
    return %c0_i32, %arg0 : i32, i32
  }
  func.func @transform_1(%arg0: i32) -> (i32, i32) {
    %c0_i32 = arith.constant 0 : i32
    %c0_i32_0 = arith.constant 0 : i32
    return %c0_i32, %arg0 : i32, i32
  }
  func.func @transform_2(%arg0: i32) -> (i32, i32) {
    %c0_i32 = arith.constant 0 : i32
    %c0_i32_0 = arith.constant 0 : i32
    %c0_i32_1 = arith.constant 0 : i32
    return %c0_i32, %c0_i32_0 : i32, i32
  }
  func.func @transform_3(%arg0: i32) -> (i32, i32) {
    %c0_i32 = arith.constant 0 : i32
    %c0_i32_0 = arith.constant 0 : i32
    %c0_i32_1 = arith.constant 0 : i32
    return %c0_i32, %c0_i32_0 : i32, i32
  }
  func.func @transform_4(%arg0: i32) -> (i32, i32) {
    %c0_i32 = arith.constant 0 : i32
    %c0_i32_0 = arith.constant 0 : i32
    %c0_i32_1 = arith.constant 0 : i32
    return %c0_i32, %c0_i32_0 : i32, i32
  }
  func.func @transform_5(%arg0: i32) -> (i32, i32) {
    %c0_i32 = arith.constant 0 : i32
    %c0_i32_0 = arith.constant 0 : i32
    %c0_i32_1 = arith.constant 0 : i32
    return %c0_i32, %c0_i32_0 : i32, i32
  }
  func.func @transform_6(%arg0: i32) -> (i32, i32) {
    %c0_i32 = arith.constant 0 : i32
    %c0_i32_0 = arith.constant 0 : i32
    %c0_i32_1 = arith.constant 0 : i32
    return %c0_i32, %c0_i32_0 : i32, i32
  }
  func.func @transform_7(%arg0: i32) -> (i32, i32) {
    %c0_i32 = arith.constant 0 : i32
    %c0_i32_0 = arith.constant 0 : i32
    %c0_i32_1 = arith.constant 0 : i32
    return %c0_i32, %c0_i32_0 : i32, i32
  }
  func.func @transform_8(%arg0: i32) -> i32 {
    %c0_i32 = arith.constant 0 : i32
    %c0_i32_0 = arith.constant 0 : i32
    return %c0_i32 : i32
  }
  func.func @transform_9(%arg0: i32) -> (i32, i32) {
    %c0_i32 = arith.constant 0 : i32
    %c0_i32_0 = arith.constant 0 : i32
    return %c0_i32, %arg0 : i32, i32
  }
}

</mosaic_0001>

<llo_original>
// kernel: tpu_custom_call.1
$region0: #{tpu_custom_call.1}
  #allocation0 [shape = 'u32[]', space=smem, size = 0x4, offset = 0x4, fixed_abs, tag = 'smem constant byte address 0x4 - core index']
  #allocation1 [shape = 'u32[144,128]{1,0:T(1,128)}', space=vmem, size = 0x12000, scoped, tag = 'internal scratch']
  #allocation2 [shape = 'f32[1]{0:T(128)S(6)}', space=smem, size = 0x200, scoped, tag = 'scoped memory for tpu_custom_call.1']
  %s0 = inlined_call_operand.vmem [shape: f32[12,128], index: 0, kind: input, shape index: {}]
  %s1 = inlined_call_operand.vmem [shape: f32[4,128], index: 1, kind: input, shape index: {}]
  %s2 = inlined_call_operand.vmem [shape: f32[32,12], index: 2, kind: input, shape index: {}]
  %s3 = inlined_call_operand.vmem [shape: f32[32,4], index: 3, kind: input, shape index: {}]
  %s4 = inlined_call_operand.vmem [shape: f32[32,1], index: 4, kind: input, shape index: {}]
  %s5 = inlined_call_operand.vmem [shape: f32[32,32], index: 5, kind: input, shape index: {}]
  %s6 = inlined_call_operand.vmem [shape: f32[32,1], index: 6, kind: input, shape index: {}]
  %s7 = inlined_call_operand.vmem [shape: f32[1,32], index: 7, kind: input, shape index: {}]
  %s8 = inlined_call_operand.<no memory space> [shape: f32[1], index: 8, kind: input, shape index: {}]
  %s9 = inlined_call_operand.hbm [shape: f32[1,128], index: 9, kind: output, shape index: {}]
  %s10 = sld [smem:[#allocation0]]
  $region46: #{tpu_custom_call.1} parent=0
    _
  %s12 = ssub.s32 1, %s10
  %s13 = scalar_select 0, %s12, %s10
  %14 = sst [smem:[#allocation2]] %s8
  $region1: #{tpu_custom_call.1} parent=0
    #allocation3 [shape = 'u8[512]{0}', space=vmem, size = 0x400, scoped, tag = 'output window, operand 0, single buffered']
    #allocation4 [shape = 's32[1]{0}', space=sflag, size = 0x4, scoped, tag = 'scoped memory for tpu_custom_call.1']
    %15 = vsyncpa [#allocation4], 0
    // Predicated region
    $region2: #{tpu_custom_call.1} parent=1 // pred_check
      _
    $region3: #{tpu_custom_call.1} parent=1 // pred_check_branch
      %17 = sbr.rel (0) target = $region5
    $region4: #{tpu_custom_call.1} parent=1 // pred_region
      _
    $region5: #{tpu_custom_call.1} parent=1 // pred_fallthru
      _
    // Predicated region
    $region6: #{tpu_custom_call.1} parent=1 // pred_check
      _
    $region7: #{tpu_custom_call.1} parent=1 // pred_check_branch
      %19 = sbr.rel (0) target = $region9
    $region8: #{tpu_custom_call.1} parent=1 // pred_region
      _
    $region9: #{tpu_custom_call.1} parent=1 // pred_fallthru
      _
    // Predicated region
    $region10: #{tpu_custom_call.1} parent=1 // pred_check
      _
    $region11: #{tpu_custom_call.1} parent=1 // pred_check_branch
      %21 = sbr.rel (0) target = $region13
    $region12: #{tpu_custom_call.1} parent=1 // pred_region
      _
    $region13: #{tpu_custom_call.1} parent=1 // pred_fallthru
      _
    // Predicated region
    $region14: #{tpu_custom_call.1} parent=1 // pred_check
      _
    $region15: #{tpu_custom_call.1} parent=1 // pred_check_branch
      %23 = sbr.rel (0) target = $region17
    $region16: #{tpu_custom_call.1} parent=1 // pred_region
      _
    $region17: #{tpu_custom_call.1} parent=1 // pred_fallthru
      _
    // Predicated region
    $region18: #{tpu_custom_call.1} parent=1 // pred_check
      _
    $region19: #{tpu_custom_call.1} parent=1 // pred_check_branch
      %25 = sbr.rel (0) target = $region21
    $region20: #{tpu_custom_call.1} parent=1 // pred_region
      _
    $region21: #{tpu_custom_call.1} parent=1 // pred_fallthru
      _
    // Predicated region
    $region22: #{tpu_custom_call.1} parent=1 // pred_check
      _
    $region23: #{tpu_custom_call.1} parent=1 // pred_check_branch
      %27 = sbr.rel (0) target = $region25
    $region24: #{tpu_custom_call.1} parent=1 // pred_region
      _
    $region25: #{tpu_custom_call.1} parent=1 // pred_fallthru
      _
    // Predicated region
    $region26: #{tpu_custom_call.1} parent=1 // pred_check
      _
    $region27: #{tpu_custom_call.1} parent=1 // pred_check_branch
      %29 = sbr.rel (0) target = $region29
    $region28: #{tpu_custom_call.1} parent=1 // pred_region
      _
    $region29: #{tpu_custom_call.1} parent=1 // pred_fallthru
      _
    // Predicated region
    $region30: #{tpu_custom_call.1} parent=1 // pred_check
      _
    $region31: #{tpu_custom_call.1} parent=1 // pred_check_branch
      %31 = sbr.rel (0) target = $region33
    $region32: #{tpu_custom_call.1} parent=1 // pred_region
      _
    $region33: #{tpu_custom_call.1} parent=1 // pred_fallthru
      _
    // Predicated region
    $region34: #{tpu_custom_call.1} parent=1 // pred_check
      _
    $region35: #{tpu_custom_call.1} parent=1 // pred_check_branch
      %33 = sbr.rel (0) target = $region37
    $region36: #{tpu_custom_call.1} parent=1 // pred_region
      _
    $region37: #{tpu_custom_call.1} parent=1 // pred_fallthru
      _
    %v34 = vld [vmem:[%s0] sm:$0xff]
    %v35 = vld [vmem:[%s0 + $0x8] sm:$0xf]
    %v36 = vld [vmem:[%s1] sm:$0xf]
    %v37 = vld [vmem:[%s2] sm:$0xff]
    %v38 = vld [vmem:[%s2 + $0x8] sm:$0xff]
    %v39 = vld [vmem:[%s2 + $0x10] sm:$0xff]
    %v40 = vld [vmem:[%s2 + $0x18] sm:$0xff]
    %v41 = vld [vmem:[%s3] sm:$0xff]
    %v42 = vld [vmem:[%s3 + $0x8] sm:$0xff]
    %v43 = vld [vmem:[%s3 + $0x10] sm:$0xff]
    %v44 = vld [vmem:[%s3 + $0x18] sm:$0xff]
    %vm45 = vcmask 31744
    %v47 = vsel %vm45, %v41, 0
    %v50 = vsel %vm45, %v42, 0
    %v53 = vsel %vm45, %v43, 0
    %v56 = vsel %vm45, %v44, 0
    %vm58 = vcmask 1043456
    %v60 = vsel %vm58, %v36, 0
    %62 = vmatprep.subr.mxu0 0.0
    %63 = vmatpush1.msra.mxu0 %v60
    %64 = vmatprep.subr.mxu0 0.0
    %65 = vmatpush1.msra.mxu0 0.0
    %66 = vmatprep.subr.mxu0 0.0
    %67 = vmatpush1.msra.mxu0 0.0
    %68 = vmatprep.subr.mxu0 0.0
    %69 = vmatpush1.msra.mxu0 0.0
    %70 = vmatprep.subr.mxu0 0.0
    %71 = vmatpush1.msra.mxu0 0.0
    %72 = vmatprep.subr.mxu0 0.0
    %73 = vmatpush1.msra.mxu0 0.0
    %74 = vmatprep.subr.mxu0 0.0
    %75 = vmatpush1.msra.mxu0 0.0
    %76 = vmatprep.subr.mxu0 0.0
    %77 = vmatpush1.msra.mxu0 0.0
    %78 = vmatprep.subr.mxu0 0.0
    %79 = vmatpush1.msra.mxu0 0.0
    %80 = vmatprep.subr.mxu0 0.0
    %81 = vmatpush1.msra.mxu0 0.0
    %82 = vmatprep.subr.mxu0 0.0
    %83 = vmatpush1.msra.mxu0 0.0
    %84 = vmatprep.subr.mxu0 0.0
    %85 = vmatpush1.msra.mxu0 0.0
    %86 = vmatprep.subr.mxu0 0.0
    %87 = vmatpush1.msra.mxu0 0.0
    %88 = vmatprep.subr.mxu0 0.0
    %89 = vmatpush1.msra.mxu0 0.0
    %90 = vmatprep.subr.mxu0 0.0
    %91 = vmatpush1.msra.mxu0 0.0
    %92 = vmatprep.subr.mxu0 0.0
    %93 = vmatpush1.msra.mxu0 0.0
    %94 = vmatprep.subr.mxu0 0.0
    %95 = vmatpush1.msra.mxu0 0.0
    %96 = vmatprep.subr.mxu0 0.0
    %97 = vmatpush1.msra.mxu0 0.0
    %98 = vmatprep.subr.mxu0 0.0
    %99 = vmatpush1.msra.mxu0 0.0
    %100 = vmatprep.subr.mxu0 0.0
    %101 = vmatpush1.msra.mxu0 0.0
    %102 = vmatprep.subr.mxu0 0.0
    %103 = vmatpush1.msra.mxu0 0.0
    %104 = vmatprep.subr.mxu0 0.0
    %105 = vmatpush1.msra.mxu0 0.0
    %106 = vmatprep.subr.mxu0 0.0
    %107 = vmatpush1.msra.mxu0 0.0
    %108 = vmatprep.subr.mxu0 0.0
    %109 = vmatpush1.msra.mxu0 0.0
    %110 = vmatprep.subr.mxu0 0.0
    %111 = vmatpush1.msra.mxu0 0.0
    %112 = vmatprep.subr.mxu0 0.0
    %113 = vmatpush1.msra.mxu0 0.0
    %114 = vmatprep.subr.mxu0 0.0
    %115 = vmatpush1.msra.mxu0 0.0
    %116 = vmatprep.subr.mxu0 0.0
    %117 = vmatpush1.msra.mxu0 0.0
    %118 = vmatprep.subr.mxu0 0.0
    %119 = vmatpush1.msra.mxu0 0.0
    %120 = vmatprep.subr.mxu0 0.0
    %121 = vmatpush1.msra.mxu0 0.0
    %122 = vmatprep.subr.mxu0 0.0
    %123 = vmatpush1.msra.mxu0 0.0
    %124 = vmatprep.subr.mxu0 0.0
    %125 = vmatpush1.msra.mxu0 0.0
    %126 = vmatprep.mubr.f32.mxu0 0.0
    %127 = vmatmul.mubr.f32.gmra.mrb[0].mxu0 %v47
    %v128 = vpop.f32.mrb[0].mxu0
    %v129 = vadd.f32 0.0, %v128
    %v130 = vpop.f32.mrb[0].mxu0
    %131 = vmatprep.mubr.f32.mxu0 0.0
    %132 = vmatmul.mubr.f32.gmra.mrb[0].mxu0 %v50
    %v133 = vpop.f32.mrb[0].mxu0
    %v134 = vadd.f32 0.0, %v133
    %v135 = vpop.f32.mrb[0].mxu0
    %136 = vmatprep.mubr.f32.mxu0 0.0
    %137 = vmatmul.mubr.f32.gmra.mrb[0].mxu0 %v53
    %v138 = vpop.f32.mrb[0].mxu0
    %v139 = vadd.f32 0.0, %v138
    %v140 = vpop.f32.mrb[0].mxu0
    %141 = vmatprep.mubr.f32.mxu0 0.0
    %142 = vmatmul.mubr.f32.gmra.mrb[0].mxu0 %v56
    %v143 = vpop.f32.mrb[0].mxu0
    %v144 = vadd.f32 0.0, %v143
    %v145 = vpop.f32.mrb[0].mxu0
    %146 = vdwg.mxu0
    %vm147 = vcmask 97280
    %v149 = vsel %vm147, %v37, 0
    %v152 = vsel %vm147, %v38, 0
    %v155 = vsel %vm147, %v39, 0
    %v158 = vsel %vm147, %v40, 0
    %v161 = vsel %vm58, %v35, 0
    %163 = vmatprep.subr.mxu0 0.0
    %164 = vmatpush1.msra.mxu0 %v34
    %165 = vmatprep.subr.mxu0 0.0
    %166 = vmatpush1.msra.mxu0 %v161
    %167 = vmatprep.subr.mxu0 0.0
    %168 = vmatpush1.msra.mxu0 0.0
    %169 = vmatprep.subr.mxu0 0.0
    %170 = vmatpush1.msra.mxu0 0.0
    %171 = vmatprep.subr.mxu0 0.0
    %172 = vmatpush1.msra.mxu0 0.0
    %173 = vmatprep.subr.mxu0 0.0
    %174 = vmatpush1.msra.mxu0 0.0
    %175 = vmatprep.subr.mxu0 0.0
    %176 = vmatpush1.msra.mxu0 0.0
    %177 = vmatprep.subr.mxu0 0.0
    %178 = vmatpush1.msra.mxu0 0.0
    %179 = vmatprep.subr.mxu0 0.0
    %180 = vmatpush1.msra.mxu0 0.0
    %181 = vmatprep.subr.mxu0 0.0
    %182 = vmatpush1.msra.mxu0 0.0
    %183 = vmatprep.subr.mxu0 0.0
    %184 = vmatpush1.msra.mxu0 0.0
    %185 = vmatprep.subr.mxu0 0.0
    %186 = vmatpush1.msra.mxu0 0.0
    %187 = vmatprep.subr.mxu0 0.0
    %188 = vmatpush1.msra.mxu0 0.0
    %189 = vmatprep.subr.mxu0 0.0
    %190 = vmatpush1.msra.mxu0 0.0
    %191 = vmatprep.subr.mxu0 0.0
    %192 = vmatpush1.msra.mxu0 0.0
    %193 = vmatprep.subr.mxu0 0.0
    %194 = vmatpush1.msra.mxu0 0.0
    %195 = vmatprep.subr.mxu0 0.0
    %196 = vmatpush1.msra.mxu0 0.0
    %197 = vmatprep.subr.mxu0 0.0
    %198 = vmatpush1.msra.mxu0 0.0
    %199 = vmatprep.subr.mxu0 0.0
    %200 = vmatpush1.msra.mxu0 0.0
    %201 = vmatprep.subr.mxu0 0.0
    %202 = vmatpush1.msra.mxu0 0.0
    %203 = vmatprep.subr.mxu0 0.0
    %204 = vmatpush1.msra.mxu0 0.0
    %205 = vmatprep.subr.mxu0 0.0
    %206 = vmatpush1.msra.mxu0 0.0
    %207 = vmatprep.subr.mxu0 0.0
    %208 = vmatpush1.msra.mxu0 0.0
    %209 = vmatprep.subr.mxu0 0.0
    %210 = vmatpush1.msra.mxu0 0.0
    %211 = vmatprep.subr.mxu0 0.0
    %212 = vmatpush1.msra.mxu0 0.0
    %213 = vmatprep.subr.mxu0 0.0
    %214 = vmatpush1.msra.mxu0 0.0
    %215 = vmatprep.subr.mxu0 0.0
    %216 = vmatpush1.msra.mxu0 0.0
    %217 = vmatprep.subr.mxu0 0.0
    %218 = vmatpush1.msra.mxu0 0.0
    %219 = vmatprep.subr.mxu0 0.0
    %220 = vmatpush1.msra.mxu0 0.0
    %221 = vmatprep.subr.mxu0 0.0
    %222 = vmatpush1.msra.mxu0 0.0
    %223 = vmatprep.subr.mxu0 0.0
    %224 = vmatpush1.msra.mxu0 0.0
    %225 = vmatprep.subr.mxu0 0.0
    %226 = vmatpush1.msra.mxu0 0.0
    %227 = vmatprep.mubr.f32.mxu0 0.0
    %228 = vmatmul.mubr.f32.gmra.mrb[0].mxu0 %v149
    %v229 = vpop.f32.mrb[0].mxu0
    %v230 = vadd.f32 %v129, %v229
    %v231 = vpop.f32.mrb[0].mxu0
    %232 = vmatprep.mubr.f32.mxu0 0.0
    %233 = vmatmul.mubr.f32.gmra.mrb[0].mxu0 %v152
    %v234 = vpop.f32.mrb[0].mxu0
    %v235 = vadd.f32 %v134, %v234
    %v236 = vpop.f32.mrb[0].mxu0
    %237 = vmatprep.mubr.f32.mxu0 0.0
    %238 = vmatmul.mubr.f32.gmra.mrb[0].mxu0 %v155
    %v239 = vpop.f32.mrb[0].mxu0
    %v240 = vadd.f32 %v139, %v239
    %v241 = vpop.f32.mrb[0].mxu0
    %242 = vmatprep.mubr.f32.mxu0 0.0
    %243 = vmatmul.mubr.f32.gmra.mrb[0].mxu0 %v158
    %v244 = vpop.f32.mrb[0].mxu0
    %v245 = vadd.f32 %v144, %v244
    %v246 = vpop.f32.mrb[0].mxu0
    %247 = vdwg.mxu0
    %v248 = vld [vmem:[%s4] sm:$0xff]
    %v249 = vld [vmem:[%s4 + $0x8] sm:$0xff]
    %v250 = vld [vmem:[%s4 + $0x10] sm:$0xff]
    %v251 = vld [vmem:[%s4 + $0x18] sm:$0xff]
    %253 = vset.pattern.permute.xlu0 0
    %254 = vperm.xlu0 %253, %v248
    %v255 = vpop.permute.xlu0 %254
    %258 = vset.pattern.permute.xlu0 0
    %259 = vperm.xlu0 %258, %v249
    %v260 = vpop.permute.xlu0 %259
    %263 = vset.pattern.permute.xlu0 0
    %264 = vperm.xlu0 %263, %v250
    %v265 = vpop.permute.xlu0 %264
    %268 = vset.pattern.permute.xlu0 0
    %269 = vperm.xlu0 %268, %v251
    %v270 = vpop.permute.xlu0 %269
    %v272 = vadd.f32 %v230, %v255
    %v273 = vadd.f32 %v235, %v260
    %v274 = vadd.f32 %v240, %v265
    %v275 = vadd.f32 %v245, %v270
    %v276 = vmax.f32 %v272, 0.0
    %v277 = vmax.f32 %v273, 0.0
    %v278 = vmax.f32 %v274, 0.0
    %v279 = vmax.f32 %v275, 0.0
    %v280 = vld [vmem:[%s5] sm:$0xff]
    %v281 = vld [vmem:[%s5 + $0x8] sm:$0xff]
    %v282 = vld [vmem:[%s5 + $0x10] sm:$0xff]
    %v283 = vld [vmem:[%s5 + $0x18] sm:$0xff]
    %v284 = vld [vmem:[%s6] sm:$0xff]
    %v285 = vld [vmem:[%s6 + $0x8] sm:$0xff]
    %v286 = vld [vmem:[%s6 + $0x10] sm:$0xff]
    %v287 = vld [vmem:[%s6 + $0x18] sm:$0xff]
    %289 = vset.pattern.permute.xlu0 0
    %290 = vperm.xlu0 %289, %v284
    %v291 = vpop.permute.xlu0 %290
    %294 = vset.pattern.permute.xlu0 0
    %295 = vperm.xlu0 %294, %v285
    %v296 = vpop.permute.xlu0 %295
    %299 = vset.pattern.permute.xlu0 0
    %300 = vperm.xlu0 %299, %v286
    %v301 = vpop.permute.xlu0 %300
    %304 = vset.pattern.permute.xlu0 0
    %305 = vperm.xlu0 %304, %v287
    %v306 = vpop.permute.xlu0 %305
    %vm308 = vcmask 261120
    %v310 = vsel %vm308, %v280, 0
    %v313 = vsel %vm308, %v281, 0
    %v316 = vsel %vm308, %v282, 0
    %v319 = vsel %vm308, %v283, 0
    %321 = vmatprep.subr.mxu0 0.0
    %322 = vmatpush1.msra.mxu0 %v276
    %323 = vmatprep.subr.mxu0 0.0
    %324 = vmatpush1.msra.mxu0 %v277
    %325 = vmatprep.subr.mxu0 0.0
    %326 = vmatpush1.msra.mxu0 %v278
    %327 = vmatprep.subr.mxu0 0.0
    %328 = vmatpush1.msra.mxu0 %v279
    %329 = vmatprep.subr.mxu0 0.0
    %330 = vmatpush1.msra.mxu0 0.0
    %331 = vmatprep.subr.mxu0 0.0
    %332 = vmatpush1.msra.mxu0 0.0
    %333 = vmatprep.subr.mxu0 0.0
    %334 = vmatpush1.msra.mxu0 0.0
    %335 = vmatprep.subr.mxu0 0.0
    %336 = vmatpush1.msra.mxu0 0.0
    %337 = vmatprep.subr.mxu0 0.0
    %338 = vmatpush1.msra.mxu0 0.0
    %339 = vmatprep.subr.mxu0 0.0
    %340 = vmatpush1.msra.mxu0 0.0
    %341 = vmatprep.subr.mxu0 0.0
    %342 = vmatpush1.msra.mxu0 0.0
    %343 = vmatprep.subr.mxu0 0.0
    %344 = vmatpush1.msra.mxu0 0.0
    %345 = vmatprep.subr.mxu0 0.0
    %346 = vmatpush1.msra.mxu0 0.0
    %347 = vmatprep.subr.mxu0 0.0
    %348 = vmatpush1.msra.mxu0 0.0
    %349 = vmatprep.subr.mxu0 0.0
    %350 = vmatpush1.msra.mxu0 0.0
    %351 = vmatprep.subr.mxu0 0.0
    %352 = vmatpush1.msra.mxu0 0.0
    %353 = vmatprep.subr.mxu0 0.0
    %354 = vmatpush1.msra.mxu0 0.0
    %355 = vmatprep.subr.mxu0 0.0
    %356 = vmatpush1.msra.mxu0 0.0
    %357 = vmatprep.subr.mxu0 0.0
    %358 = vmatpush1.msra.mxu0 0.0
    %359 = vmatprep.subr.mxu0 0.0
    %360 = vmatpush1.msra.mxu0 0.0
    %361 = vmatprep.subr.mxu0 0.0
    %362 = vmatpush1.msra.mxu0 0.0
    %363 = vmatprep.subr.mxu0 0.0
    %364 = vmatpush1.msra.mxu0 0.0
    %365 = vmatprep.subr.mxu0 0.0
    %366 = vmatpush1.msra.mxu0 0.0
    %367 = vmatprep.subr.mxu0 0.0
    %368 = vmatpush1.msra.mxu0 0.0
    %369 = vmatprep.subr.mxu0 0.0
    %370 = vmatpush1.msra.mxu0 0.0
    %371 = vmatprep.subr.mxu0 0.0
    %372 = vmatpush1.msra.mxu0 0.0
    %373 = vmatprep.subr.mxu0 0.0
    %374 = vmatpush1.msra.mxu0 0.0
    %375 = vmatprep.subr.mxu0 0.0
    %376 = vmatpush1.msra.mxu0 0.0
    %377 = vmatprep.subr.mxu0 0.0
    %378 = vmatpush1.msra.mxu0 0.0
    %379 = vmatprep.subr.mxu0 0.0
    %380 = vmatpush1.msra.mxu0 0.0
    %381 = vmatprep.subr.mxu0 0.0
    %382 = vmatpush1.msra.mxu0 0.0
    %383 = vmatprep.subr.mxu0 0.0
    %384 = vmatpush1.msra.mxu0 0.0
    %385 = vmatprep.mubr.f32.mxu0 0.0
    %386 = vmatmul.mubr.f32.gmra.mrb[0].mxu0 %v310
    %v387 = vpop.f32.mrb[0].mxu0
    %v388 = vadd.f32 %v291, %v387
    %v389 = vpop.f32.mrb[0].mxu0
    %390 = vmatprep.mubr.f32.mxu0 0.0
    %391 = vmatmul.mubr.f32.gmra.mrb[0].mxu0 %v313
    %v392 = vpop.f32.mrb[0].mxu0
    %v393 = vadd.f32 %v296, %v392
    %v394 = vpop.f32.mrb[0].mxu0
    %395 = vmatprep.mubr.f32.mxu0 0.0
    %396 = vmatmul.mubr.f32.gmra.mrb[0].mxu0 %v316
    %v397 = vpop.f32.mrb[0].mxu0
    %v398 = vadd.f32 %v301, %v397
    %v399 = vpop.f32.mrb[0].mxu0
    %400 = vmatprep.mubr.f32.mxu0 0.0
    %401 = vmatmul.mubr.f32.gmra.mrb[0].mxu0 %v319
    %v402 = vpop.f32.mrb[0].mxu0
    %v403 = vadd.f32 %v306, %v402
    %v404 = vpop.f32.mrb[0].mxu0
    %405 = vdwg.mxu0
    %v406 = vmax.f32 %v388, 0.0
    %v407 = vmax.f32 %v393, 0.0
    %v408 = vmax.f32 %v398, 0.0
    %v409 = vmax.f32 %v403, 0.0
    %v410 = vld [vmem:[%s7] sm:$0x1]
    %s411 = sld [smem:[#allocation2]]
    %v412 = vstv %s411
    %v414 = vsel %vm308, %v410, 0
    %416 = vmatprep.subr.mxu0 0.0
    %417 = vmatpush1.msra.mxu0 %v406
    %418 = vmatprep.subr.mxu0 0.0
    %419 = vmatpush1.msra.mxu0 %v407
    %420 = vmatprep.subr.mxu0 0.0
    %421 = vmatpush1.msra.mxu0 %v408
    %422 = vmatprep.subr.mxu0 0.0
    %423 = vmatpush1.msra.mxu0 %v409
    %424 = vmatprep.subr.mxu0 0.0
    %425 = vmatpush1.msra.mxu0 0.0
    %426 = vmatprep.subr.mxu0 0.0
    %427 = vmatpush1.msra.mxu0 0.0
    %428 = vmatprep.subr.mxu0 0.0
    %429 = vmatpush1.msra.mxu0 0.0
    %430 = vmatprep.subr.mxu0 0.0
    %431 = vmatpush1.msra.mxu0 0.0
    %432 = vmatprep.subr.mxu0 0.0
    %433 = vmatpush1.msra.mxu0 0.0
    %434 = vmatprep.subr.mxu0 0.0
    %435 = vmatpush1.msra.mxu0 0.0
    %436 = vmatprep.subr.mxu0 0.0
    %437 = vmatpush1.msra.mxu0 0.0
    %438 = vmatprep.subr.mxu0 0.0
    %439 = vmatpush1.msra.mxu0 0.0
    %440 = vmatprep.subr.mxu0 0.0
    %441 = vmatpush1.msra.mxu0 0.0
    %442 = vmatprep.subr.mxu0 0.0
    %443 = vmatpush1.msra.mxu0 0.0
    %444 = vmatprep.subr.mxu0 0.0
    %445 = vmatpush1.msra.mxu0 0.0
    %446 = vmatprep.subr.mxu0 0.0
    %447 = vmatpush1.msra.mxu0 0.0
    %448 = vmatprep.subr.mxu0 0.0
    %449 = vmatpush1.msra.mxu0 0.0
    %450 = vmatprep.subr.mxu0 0.0
    %451 = vmatpush1.msra.mxu0 0.0
    %452 = vmatprep.subr.mxu0 0.0
    %453 = vmatpush1.msra.mxu0 0.0
    %454 = vmatprep.subr.mxu0 0.0
    %455 = vmatpush1.msra.mxu0 0.0
    %456 = vmatprep.subr.mxu0 0.0
    %457 = vmatpush1.msra.mxu0 0.0
    %458 = vmatprep.subr.mxu0 0.0
    %459 = vmatpush1.msra.mxu0 0.0
    %460 = vmatprep.subr.mxu0 0.0
    %461 = vmatpush1.msra.mxu0 0.0
    %462 = vmatprep.subr.mxu0 0.0
    %463 = vmatpush1.msra.mxu0 0.0
    %464 = vmatprep.subr.mxu0 0.0
    %465 = vmatpush1.msra.mxu0 0.0
    %466 = vmatprep.subr.mxu0 0.0
    %467 = vmatpush1.msra.mxu0 0.0
    %468 = vmatprep.subr.mxu0 0.0
    %469 = vmatpush1.msra.mxu0 0.0
    %470 = vmatprep.subr.mxu0 0.0
    %471 = vmatpush1.msra.mxu0 0.0
    %472 = vmatprep.subr.mxu0 0.0
    %473 = vmatpush1.msra.mxu0 0.0
    %474 = vmatprep.subr.mxu0 0.0
    %475 = vmatpush1.msra.mxu0 0.0
    %476 = vmatprep.subr.mxu0 0.0
    %477 = vmatpush1.msra.mxu0 0.0
    %478 = vmatprep.subr.mxu0 0.0
    %479 = vmatpush1.msra.mxu0 0.0
    %480 = vmatprep.mubr.f32.mxu0 0.0
    %481 = vmatmul.mubr.f32.gmra.mrb[0].mxu0 %v414
    %v482 = vpop.f32.mrb[0].mxu0
    %v483 = vadd.f32 %v412, %v482
    %v484 = vpop.f32.mrb[0].mxu0
    %485 = vdwg.mxu0
    %486 = vst [vmem:[#allocation3] sm:$0x1] %v483
    // Predicated region
    $region38: #{tpu_custom_call.1} parent=1 // pred_check
      _
    $region39: #{tpu_custom_call.1} parent=1 // pred_check_branch
      %488 = sbr.rel (0) target = $region41
    $region40: #{tpu_custom_call.1} parent=1 // pred_region
      %s490 = ssub.s32 16, 16
      %491 = vsyncadd [#allocation4], %s490
      %s493 = sshll.u32 [#allocation3], 4
      %s494 = int_to_ptr.vmem [resolvable:$true] %s493
      %496 = dma.vmem_to_hbm [thread:$0]  %s494, 16, %s9, [#allocation4]
    $region41: #{tpu_custom_call.1} parent=1 // pred_fallthru
      _
    // Predicated region
    $region42: #{tpu_custom_call.1} parent=1 // pred_check
      _
    $region43: #{tpu_custom_call.1} parent=1 // pred_check_branch
      %498 = sbr.rel (0) target = $region45
    $region44: #{tpu_custom_call.1} parent=1 // pred_region
      %499 = dma.done [#allocation4], 16
    $region45: #{tpu_custom_call.1} parent=1 // pred_fallthru
      _
    %500 = vsyncpa [#allocation4], 1

</llo_original>
